<compile_context>
chip_gen: v6e
topology: v6e:2x2x1
jax: 0.10.0
libtpu: 0.0.40
codegen_flags: <defaults>
</compile_context>

<pallas_src>
import functools

import jax
import jax.numpy as jnp
from jax.experimental import pallas as pl
from jax.experimental.pallas import tpu as pltpu

HIDDEN = 256
DEFAULT_COMPUTE_DTYPE = jnp.bfloat16   # MXU-bound kernel: bf16 operands, f32 acc

_MAX_BLOCK_B = 2048        # cap keeps f32 intermediates ~8 MiB (safe on v7x 64 MiB VMEM)
_SINGLE_BLOCK_MAX = 1024   # below this a single unsplit block minimizes padding waste


def _round_up(n, m):
    return ((n + m - 1) // m) * m


def _choose_block_b(batch):
    """B-adaptive batch tile.

    Small/moderate B: one block equal to round_up(B, 8) -- block_shape equals
    the full (padded) dim, so the 128-lane output constraint does not apply and
    small-batch latency stays proportional to B.
    Large B: >= 2 blocks (keeps both v7x TensorCores busy via the "parallel"
    grid axis), lane-aligned (multiple of 128), capped at _MAX_BLOCK_B rows.
    """
    b8 = _round_up(batch, 8)
    if b8 <= _SINGLE_BLOCK_MAX:
        return b8
    half = _round_up(-(-b8 // 2), 128)
    return min(_MAX_BLOCK_B, half)


def _vmem_limit_bytes(block_b, num_features, hidden, compute_dtype):
    """Explicit scoped-VMEM request sized from the working set (with headroom)."""
    csz = jnp.dtype(compute_dtype).itemsize
    weights = 2 * (num_features * hidden + 2 * hidden * hidden + 4 * hidden) * csz
    x_tiles = 2 * block_b * num_features * csz          # double-buffered input tile
    out_tiles = 2 * block_b * 4                          # double-buffered output row
    intermediates = 4 * block_b * hidden * 4             # live f32 h's + cast copies
    total = weights + x_tiles + out_tiles + intermediates + (4 << 20)
    # Floor at 32 MiB (>= every chip's scoped default we rely on), cap at 48 MiB
    # so the request is always satisfiable (v7x physical VMEM is 64 MiB).
    return int(min(max(total, 32 << 20), 48 << 20))


def _residual_mlp_kernel(x_ref, w1_ref, b1_ref, w2_ref, b2_ref,
                         w3_ref, b3_ref, wv_ref, bv_ref, out_ref):
    # All weights resident in VMEM (constant block indices -> fetched once);
    # three MXU matmuls with f32 accumulation, biases/activations in f32.
    cdt = w1_ref.dtype
    x = x_ref[...]
    h = jnp.dot(x, w1_ref[...], preferred_element_type=jnp.float32) + b1_ref[...]
    h = jnp.maximum(h, 0.0)
    h = jnp.dot(h.astype(cdt), w2_ref[...],
                preferred_element_type=jnp.float32) + b2_ref[...]
    h = jnp.maximum(h, 0.0)
    h = jnp.dot(h.astype(cdt), w3_ref[...],
                preferred_element_type=jnp.float32) + b3_ref[...]
    h = jnp.maximum(h, 0.0)
    # Final (H -> 1) projection: VPU elementwise multiply + cross-lane reduce
    # (avoids a 1-column MXU pass), stored lane-dense as a (1, block_b) row.
    v = jnp.sum(h * wv_ref[...], axis=-1) + bv_ref[0]          # (block_b,)
    out_ref[...] = v[None, :].astype(out_ref.dtype)            # (1, block_b)


def prepare_params(params, compute_dtype=DEFAULT_COMPUTE_DTYPE):
    """Cast/reshape the module parameters ONCE, outside the jitted forward.

    Matmul weights go to `compute_dtype` (bf16 by default; f32 accumulation is
    kept in-kernel).  Biases and the v_out row stay f32 on the VPU path.
    """
    w1, b1, w2, b2, w3, b3, wv, bv = params
    H = w1.shape[1]
    return (
        w1.astype(compute_dtype),
        b1.reshape(1, H).astype(jnp.float32),
        w2.astype(compute_dtype),
        b2.reshape(1, H).astype(jnp.float32),
        w3.astype(compute_dtype),
        b3.reshape(1, H).astype(jnp.float32),
        wv.reshape(1, H).astype(jnp.float32),   # (1, H) row for VPU reduce
        bv.reshape(1).astype(jnp.float32),      # scalar, lives in SMEM
    )


@functools.partial(jax.jit, static_argnames=("block_b",))
def residual_forward(x, prepared_params, block_b=None):
    """x: (B, F) float32. prepared_params: output of prepare_params().
    Returns value: (B, 1) float32.

    block_b: rows per grid step.  None (default) -> B-adaptive choice.  If set
    explicitly it must be a multiple of 8, and a multiple of 128 whenever the
    grid has more than one block (lane constraint on the (1, block_b) output).
    """
    w1, b1, w2, b2, w3, b3, wv_row, bv_s = prepared_params
    B, F = x.shape
    H = w1.shape[1]
    compute_dtype = w1.dtype

    if block_b is None:
        block_b = _choose_block_b(B)
    if block_b % 8 != 0:
        raise ValueError("block_b must be a multiple of 8")
    num_blocks = pl.cdiv(B, block_b)
    if num_blocks > 1 and block_b % 128 != 0:
        raise ValueError(
            "block_b must be a multiple of 128 when the grid has more than one block")

    B_pad = num_blocks * block_b
    if B_pad != B:
        x = jnp.pad(x, ((0, B_pad - B), (0, 0)))
    x_c = x.astype(compute_dtype)

    out2d = pl.pallas_call(
        _residual_mlp_kernel,
        out_shape=jax.ShapeDtypeStruct((1, B_pad), jnp.float32),
        grid_spec=pltpu.PrefetchScalarGridSpec(
            num_scalar_prefetch=0,
            grid=(num_blocks,),
            in_specs=[
                pl.BlockSpec((block_b, F), lambda i: (i, 0)),   # x tile
                pl.BlockSpec((F, H), lambda i: (0, 0)),         # w1 (resident)
                pl.BlockSpec((1, H), lambda i: (0, 0)),         # b1
                pl.BlockSpec((H, H), lambda i: (0, 0)),         # w2
                pl.BlockSpec((1, H), lambda i: (0, 0)),         # b2
                pl.BlockSpec((H, H), lambda i: (0, 0)),         # w3
                pl.BlockSpec((1, H), lambda i: (0, 0)),         # b3
                pl.BlockSpec((1, H), lambda i: (0, 0)),         # wv row
                pl.BlockSpec(memory_space=pltpu.MemorySpace.SMEM),  # bv scalar
            ],
            out_specs=pl.BlockSpec((1, block_b), lambda i: (0, i)),
        ),
        compiler_params=pltpu.CompilerParams(
            dimension_semantics=("parallel",),
            vmem_limit_bytes=_vmem_limit_bytes(block_b, F, H, compute_dtype),
        ),
    )(x_c, w1, b1, w2, b2, w3, b3, wv_row, bv_s)

    # Lane-dense kernel output -> (B, 1) column (free layout plumbing in XLA).
    return out2d[0, :B][:, None]


def init_params(key, num_features, hidden=HIDDEN):
    """nn.Linear-style init (uniform +/- 1/sqrt(fan_in)); v_out zero-initialized
    exactly as in the PyTorch module."""
    ks = jax.random.split(key, 6)

    def linear(kw, kb, fan_in, fan_out):
        bound = 1.0 / jnp.sqrt(fan_in)
        w = jax.random.uniform(kw, (fan_in, fan_out), jnp.float32, -bound, bound)
        b = jax.random.uniform(kb, (1, fan_out), jnp.float32, -bound, bound)
        return w, b

    w1, b1 = linear(ks[0], ks[1], num_features, hidden)
    w2, b2 = linear(ks[2], ks[3], hidden, hidden)
    w3, b3 = linear(ks[4], ks[5], hidden, hidden)
    wv = jnp.zeros((hidden, 1), jnp.float32)   # self.v_out.weight = zeros
    bv = jnp.zeros((1, 1), jnp.float32)        # self.v_out.bias   = zeros
    return (w1, b1, w2, b2, w3, b3, wv, bv)


def residual_ref(x, params):
    w1, b1, w2, b2, w3, b3, wv, bv = params
    h = jnp.maximum(x @ w1 + b1, 0.0)
    h = jnp.maximum(h @ w2 + b2, 0.0)
    h = jnp.maximum(h @ w3 + b3, 0.0)
    return h @ wv + bv


if __name__ == "__main__":
    key = jax.random.PRNGKey(0)
    k_x, k_p, k_wv, k_bv, k_x2 = jax.random.split(key, 5)

    batch = 8
    num_features = 32  # env_params['num_features']

    x = jax.random.normal(k_x, (batch, num_features), jnp.float32)
    params0 = init_params(k_p, num_features)

    # Faithful module init: v_out weights/bias are zero -> output must be 0
    # (holds exactly even on the bf16 default path).
    prep0 = prepare_params(params0)                      # bf16 weights (default)
    out0 = residual_forward(x, prep0)
    jax.block_until_ready(out0)
    assert out0.shape == (batch, 1), out0.shape
    assert jnp.allclose(out0, 0.0), "zero-init v_out should give zero output"

    # Non-trivial numerical check: randomize v_out weights/bias.
    w1, b1, w2, b2, w3, b3, _, _ = params0
    wv = jax.random.uniform(k_wv, (HIDDEN, 1), jnp.float32, -0.0625, 0.0625)
    bv = jax.random.uniform(k_bv, (1, 1), jnp.float32, -0.0625, 0.0625)
    params = (w1, b1, w2, b2, w3, b3, wv, bv)
    ref = residual_ref(x, params)

    # f32 compute path: tight tolerance.
    prep_f32 = prepare_params(params, jnp.float32)
    out_f32 = residual_forward(x, prep_f32)
    jax.block_until_ready(out_f32)
    assert out_f32.shape == (batch, 1), out_f32.shape
    assert jnp.allclose(out_f32, ref, atol=1e-4, rtol=1e-4), "mismatch vs reference (f32)"

    # bf16 default path (MXU-friendly on all generations): loose tolerance
    # (error is input/weight quantization; accumulation stays f32).
    prep_bf16 = prepare_params(params)
    out_bf16 = residual_forward(x, prep_bf16)
    jax.block_until_ready(out_bf16)
    assert out_bf16.shape == (batch, 1)
    assert jnp.allclose(out_bf16, ref, atol=1e-1, rtol=1e-1), "bf16 path diverged"

    # Exercise a multi-block grid + tail padding with an explicit lane-aligned
    # block_b (B not a multiple of block_b).
    big_batch = 300
    x2 = jax.random.normal(k_x2, (big_batch, num_features), jnp.float32)
    ref2 = residual_ref(x2, params)

    out2 = residual_forward(x2, prep_f32, block_b=128)
    jax.block_until_ready(out2)
    assert out2.shape == (big_batch, 1), out2.shape
    assert jnp.allclose(out2, ref2, atol=1e-4, rtol=1e-4), "mismatch (tail/padded, f32)"

    # Adaptive block_b (single block of 304 rows here) on the bf16 path.
    out2b = residual_forward(x2, prep_bf16)
    jax.block_until_ready(out2b)
    assert out2b.shape == (big_batch, 1)
    assert bool(jnp.all(jnp.isfinite(out2b)))
    assert jnp.allclose(out2b, ref2, atol=1e-1, rtol=1e-1), "bf16 adaptive path diverged"

    print("KERNEL_OK")
</pallas_src>

<mosaic_0001>
module attributes {stable_mosaic.version = 11 : i64} {
  func.func @_residual_mlp_kernel(%arg0: i32, %arg1: memref<8x32xbf16, #tpu.memory_space<vmem>>, %arg2: memref<32x256xbf16, #tpu.memory_space<vmem>>, %arg3: memref<1x256xf32, #tpu.memory_space<vmem>>, %arg4: memref<256x256xbf16, #tpu.memory_space<vmem>>, %arg5: memref<1x256xf32, #tpu.memory_space<vmem>>, %arg6: memref<256x256xbf16, #tpu.memory_space<vmem>>, %arg7: memref<1x256xf32, #tpu.memory_space<vmem>>, %arg8: memref<1x256xf32, #tpu.memory_space<vmem>>, %arg9: memref<1xf32, #tpu.memory_space<smem>>, %arg10: memref<1x8xf32, #tpu.memory_space<vmem>>) attributes {dimension_semantics = [#tpu.dimension_semantics<parallel>], iteration_bounds = array<i64: 1>, scalar_prefetch = 0 : i64, scratch_operands = 0 : i64, tpu.core_type = #tpu.core_type<tc>, window_params = [{transform_indices = @transform_0, window_bounds = array<i64: 8, 32>}, {pipeline_mode = #tpu.pipeline_mode<synchronous>, transform_indices = @transform_1, window_bounds = array<i64: 32, 256>}, {pipeline_mode = #tpu.pipeline_mode<synchronous>, transform_indices = @transform_2, window_bounds = array<i64: 1, 256>}, {pipeline_mode = #tpu.pipeline_mode<synchronous>, transform_indices = @transform_3, window_bounds = array<i64: 256, 256>}, {pipeline_mode = #tpu.pipeline_mode<synchronous>, transform_indices = @transform_4, window_bounds = array<i64: 1, 256>}, {pipeline_mode = #tpu.pipeline_mode<synchronous>, transform_indices = @transform_5, window_bounds = array<i64: 256, 256>}, {pipeline_mode = #tpu.pipeline_mode<synchronous>, transform_indices = @transform_6, window_bounds = array<i64: 1, 256>}, {pipeline_mode = #tpu.pipeline_mode<synchronous>, transform_indices = @transform_7, window_bounds = array<i64: 1, 256>}, {transform_indices = @transform_8, window_bounds = array<i64: 1>}, {transform_indices = @transform_9, window_bounds = array<i64: 1, 8>}]} {
    %c0 = arith.constant 0 : index
    %c0_0 = arith.constant 0 : index
    %0 = vector.load %arg1[%c0, %c0_0] : memref<8x32xbf16, #tpu.memory_space<vmem>>, vector<8x32xbf16>
    %c0_1 = arith.constant 0 : index
    %c0_2 = arith.constant 0 : index
    %1 = vector.load %arg2[%c0_1, %c0_2] : memref<32x256xbf16, #tpu.memory_space<vmem>>, vector<32x256xbf16>
    %cst = arith.constant dense<0.000000e+00> : vector<8x256xf32>
    %2 = tpu.matmul %0, %1, %cst {dimension_numbers = #tpu.dot_dimension_numbers<[1], [0], [0], [1], [0, 0, 1, 1], [], []>} : vector<8x32xbf16>, vector<32x256xbf16>, vector<8x256xf32> -> vector<8x256xf32>
    %c0_3 = arith.constant 0 : index
    %c0_4 = arith.constant 0 : index
    %3 = vector.load %arg3[%c0_3, %c0_4] : memref<1x256xf32, #tpu.memory_space<vmem>>, vector<1x256xf32>
    %4 = vector.broadcast %3 : vector<1x256xf32> to vector<8x256xf32>
    %5 = arith.addf %2, %4 : vector<8x256xf32>
    %cst_5 = arith.constant 0.000000e+00 : f32
    %6 = vector.broadcast %cst_5 : f32 to vector<8x256xf32>
    %7 = arith.maximumf %5, %6 : vector<8x256xf32>
    %8 = arith.truncf %7 : vector<8x256xf32> to vector<8x256xbf16>
    %c0_6 = arith.constant 0 : index
    %c0_7 = arith.constant 0 : index
    %9 = vector.load %arg4[%c0_6, %c0_7] : memref<256x256xbf16, #tpu.memory_space<vmem>>, vector<256x256xbf16>
    %cst_8 = arith.constant dense<0.000000e+00> : vector<8x256xf32>
    %10 = tpu.matmul %8, %9, %cst_8 {dimension_numbers = #tpu.dot_dimension_numbers<[1], [0], [0], [1], [0, 0, 1, 1], [], []>} : vector<8x256xbf16>, vector<256x256xbf16>, vector<8x256xf32> -> vector<8x256xf32>
    %c0_9 = arith.constant 0 : index
    %c0_10 = arith.constant 0 : index
    %11 = vector.load %arg5[%c0_9, %c0_10] : memref<1x256xf32, #tpu.memory_space<vmem>>, vector<1x256xf32>
    %12 = vector.broadcast %11 : vector<1x256xf32> to vector<8x256xf32>
    %13 = arith.addf %10, %12 : vector<8x256xf32>
    %cst_11 = arith.constant 0.000000e+00 : f32
    %14 = vector.broadcast %cst_11 : f32 to vector<8x256xf32>
    %15 = arith.maximumf %13, %14 : vector<8x256xf32>
    %16 = arith.truncf %15 : vector<8x256xf32> to vector<8x256xbf16>
    %c0_12 = arith.constant 0 : index
    %c0_13 = arith.constant 0 : index
    %17 = vector.load %arg6[%c0_12, %c0_13] : memref<256x256xbf16, #tpu.memory_space<vmem>>, vector<256x256xbf16>
    %cst_14 = arith.constant dense<0.000000e+00> : vector<8x256xf32>
    %18 = tpu.matmul %16, %17, %cst_14 {dimension_numbers = #tpu.dot_dimension_numbers<[1], [0], [0], [1], [0, 0, 1, 1], [], []>} : vector<8x256xbf16>, vector<256x256xbf16>, vector<8x256xf32> -> vector<8x256xf32>
    %c0_15 = arith.constant 0 : index
    %c0_16 = arith.constant 0 : index
    %19 = vector.load %arg7[%c0_15, %c0_16] : memref<1x256xf32, #tpu.memory_space<vmem>>, vector<1x256xf32>
    %20 = vector.broadcast %19 : vector<1x256xf32> to vector<8x256xf32>
    %21 = arith.addf %18, %20 : vector<8x256xf32>
    %cst_17 = arith.constant 0.000000e+00 : f32
    %22 = vector.broadcast %cst_17 : f32 to vector<8x256xf32>
    %23 = arith.maximumf %21, %22 : vector<8x256xf32>
    %c0_18 = arith.constant 0 : index
    %c0_19 = arith.constant 0 : index
    %24 = vector.load %arg8[%c0_18, %c0_19] : memref<1x256xf32, #tpu.memory_space<vmem>>, vector<1x256xf32>
    %25 = vector.broadcast %24 : vector<1x256xf32> to vector<8x256xf32>
    %26 = arith.mulf %23, %25 : vector<8x256xf32>
    %cst_20 = arith.constant dense<0.000000e+00> : vector<8xf32>
    %27 = vector.multi_reduction <add>, %26, %cst_20 [1] : vector<8x256xf32> to vector<8xf32>
    %c0_21 = arith.constant 0 : index
    %28 = memref.load %arg9[%c0_21] : memref<1xf32, #tpu.memory_space<smem>>
    %29 = vector.broadcast %28 : f32 to vector<8xf32>
    %30 = arith.addf %27, %29 : vector<8xf32>
    %31 = vector.shape_cast %30 : vector<8xf32> to vector<1x8xf32>
    %c0_22 = arith.constant 0 : index
    %c0_23 = arith.constant 0 : index
    %32 = vector.load %arg10[%c0_22, %c0_23] : memref<1x8xf32, #tpu.memory_space<vmem>>, vector<1x8xf32>
    tpu.vector_store %arg10[%c0_22, %c0_23], %31 {strides = array<i32>} : memref<1x8xf32, #tpu.memory_space<vmem>>, vector<1x8xf32>,
    return
  }
  func.func @transform_0(%arg0: i32) -> (i32, i32) {
    %c0_i32 = arith.constant 0 : i32
    %c0_i32_0 = arith.constant 0 : i32
    return %arg0, %c0_i32 : i32, i32
  }
  func.func @transform_1(%arg0: i32) -> (i32, i32) {
    %c0_i32 = arith.constant 0 : i32
    %c0_i32_0 = arith.constant 0 : i32
    %c0_i32_1 = arith.constant 0 : i32
    return %c0_i32, %c0_i32_0 : i32, i32
  }
  func.func @transform_2(%arg0: i32) -> (i32, i32) {
    %c0_i32 = arith.constant 0 : i32
    %c0_i32_0 = arith.constant 0 : i32
    %c0_i32_1 = arith.constant 0 : i32
    return %c0_i32, %c0_i32_0 : i32, i32
  }
  func.func @transform_3(%arg0: i32) -> (i32, i32) {
    %c0_i32 = arith.constant 0 : i32
    %c0_i32_0 = arith.constant 0 : i32
    %c0_i32_1 = arith.constant 0 : i32
    return %c0_i32, %c0_i32_0 : i32, i32
  }
  func.func @transform_4(%arg0: i32) -> (i32, i32) {
    %c0_i32 = arith.constant 0 : i32
    %c0_i32_0 = arith.constant 0 : i32
    %c0_i32_1 = arith.constant 0 : i32
    return %c0_i32, %c0_i32_0 : i32, i32
  }
  func.func @transform_5(%arg0: i32) -> (i32, i32) {
    %c0_i32 = arith.constant 0 : i32
    %c0_i32_0 = arith.constant 0 : i32
    %c0_i32_1 = arith.constant 0 : i32
    return %c0_i32, %c0_i32_0 : i32, i32
  }
  func.func @transform_6(%arg0: i32) -> (i32, i32) {
    %c0_i32 = arith.constant 0 : i32
    %c0_i32_0 = arith.constant 0 : i32
    %c0_i32_1 = arith.constant 0 : i32
    return %c0_i32, %c0_i32_0 : i32, i32
  }
  func.func @transform_7(%arg0: i32) -> (i32, i32) {
    %c0_i32 = arith.constant 0 : i32
    %c0_i32_0 = arith.constant 0 : i32
    %c0_i32_1 = arith.constant 0 : i32
    return %c0_i32, %c0_i32_0 : i32, i32
  }
  func.func @transform_8(%arg0: i32) -> i32 {
    %c0_i32 = arith.constant 0 : i32
    %c0_i32_0 = arith.constant 0 : i32
    return %c0_i32 : i32
  }
  func.func @transform_9(%arg0: i32) -> (i32, i32) {
    %c0_i32 = arith.constant 0 : i32
    %c0_i32_0 = arith.constant 0 : i32
    return %c0_i32, %arg0 : i32, i32
  }
}

</mosaic_0001>

<llo_original>
// kernel: residual_forward.1
$region0: #{residual_forward.1}
  #allocation0 [shape = 'u32[]', space=smem, size = 0x4, offset = 0x4, fixed_abs, tag = 'smem constant byte address 0x4 - core index']
  #allocation1 [shape = 'u32[144,128]{1,0:T(1,128)}', space=vmem, size = 0x12000, scoped, tag = 'internal scratch']
  #allocation2 [shape = 'f32[1]{0:T(128)S(6)}', space=smem, size = 0x200, scoped, tag = 'scoped memory for residual_forward.1']
  %s0 = inlined_call_operand.vmem [shape: bf16[8,32], index: 0, kind: input, shape index: {}]
  %s1 = inlined_call_operand.hbm [shape: bf16[32,256], index: 1, kind: input, shape index: {}]
  %s2 = inlined_call_operand.vmem [shape: f32[1,256], index: 2, kind: input, shape index: {}]
  %s3 = inlined_call_operand.hbm [shape: bf16[256,256], index: 3, kind: input, shape index: {}]
  %s4 = inlined_call_operand.vmem [shape: f32[1,256], index: 4, kind: input, shape index: {}]
  %s5 = inlined_call_operand.hbm [shape: bf16[256,256], index: 5, kind: input, shape index: {}]
  %s6 = inlined_call_operand.vmem [shape: f32[1,256], index: 6, kind: input, shape index: {}]
  %s7 = inlined_call_operand.vmem [shape: f32[1,256], index: 7, kind: input, shape index: {}]
  %s8 = inlined_call_operand.<no memory space> [shape: f32[1], index: 8, kind: input, shape index: {}]
  %s9 = inlined_call_operand.hbm [shape: f32[1,8], index: 9, kind: output, shape index: {}]
  %s10 = sld [smem:[#allocation0]]
  $region58: #{residual_forward.1} parent=0
    _
  %s12 = ssub.s32 1, %s10
  %s13 = scalar_select 0, %s12, %s10
  %14 = sst [smem:[#allocation2]] %s8
  $region1: #{residual_forward.1} parent=0
    #allocation3 [shape = 'u8[16384]{0}', space=vmem, size = 0x4000, scoped, tag = 'input window, operand 1, single buffered']
    #allocation4 [shape = 's32[1]{0}', space=sflag, size = 0x4, scoped, tag = 'scoped memory for residual_forward.1']
    #allocation5 [shape = 's32[1]{0}', space=sflag, size = 0x4, scoped, tag = 'scoped memory for residual_forward.1']
    #allocation6 [shape = 'u8[131072]{0}', space=vmem, size = 0x20000, scoped, tag = 'input window, operand 3, single buffered']
    #allocation7 [shape = 's32[1]{0}', space=sflag, size = 0x4, scoped, tag = 'scoped memory for residual_forward.1']
    #allocation8 [shape = 'u8[131072]{0}', space=vmem, size = 0x20000, scoped, tag = 'input window, operand 5, single buffered']
    #allocation9 [shape = 'u8[512]{0}', space=vmem, size = 0x400, scoped, tag = 'output window, operand 0, single buffered']
    %15 = vsyncpa [#allocation4], 0
    %16 = vsyncpa [#allocation7], 0
    %17 = vsyncpa [#allocation5], 0
    // Predicated region
    $region2: #{residual_forward.1} parent=1 // pred_check
      _
    $region3: #{residual_forward.1} parent=1 // pred_check_branch
      %19 = sbr.rel (0) target = $region5
    $region4: #{residual_forward.1} parent=1 // pred_region
      _
    $region5: #{residual_forward.1} parent=1 // pred_fallthru
      _
    // Predicated region
    $region6: #{residual_forward.1} parent=1 // pred_check
      _
    $region7: #{residual_forward.1} parent=1 // pred_check_branch
      %21 = sbr.rel (0) target = $region9
    $region8: #{residual_forward.1} parent=1 // pred_region
      %s23 = ssub.s32 512, 512
      %24 = vsyncadd [#allocation4], %s23
      %s25 = sshll.u32 [#allocation3], 4
      %s26 = int_to_ptr.vmem [resolvable:$true] %s25
      %31 = dma.hbm_to_vmem [thread:$0]  %s1, 512, %s26, [#allocation4], 128, 128, 8
    $region9: #{residual_forward.1} parent=1 // pred_fallthru
      _
    // Predicated region
    $region10: #{residual_forward.1} parent=1 // pred_check
      _
    $region11: #{residual_forward.1} parent=1 // pred_check_branch
      %33 = sbr.rel (0) target = $region13
    $region12: #{residual_forward.1} parent=1 // pred_region
      _
    $region13: #{residual_forward.1} parent=1 // pred_fallthru
      _
    // Predicated region
    $region14: #{residual_forward.1} parent=1 // pred_check
      _
    $region15: #{residual_forward.1} parent=1 // pred_check_branch
      %35 = sbr.rel (0) target = $region17
    $region16: #{residual_forward.1} parent=1 // pred_region
      %s37 = ssub.s32 4096, 4096
      %38 = vsyncadd [#allocation7], %s37
      %s39 = sshll.u32 [#allocation6], 4
      %s40 = int_to_ptr.vmem [resolvable:$true] %s39
      %45 = dma.hbm_to_vmem [thread:$0]  %s3, 4096, %s40, [#allocation7], 128, 128, 8
    $region17: #{residual_forward.1} parent=1 // pred_fallthru
      _
    // Predicated region
    $region18: #{residual_forward.1} parent=1 // pred_check
      _
    $region19: #{residual_forward.1} parent=1 // pred_check_branch
      %47 = sbr.rel (0) target = $region21
    $region20: #{residual_forward.1} parent=1 // pred_region
      _
    $region21: #{residual_forward.1} parent=1 // pred_fallthru
      _
    // Predicated region
    $region22: #{residual_forward.1} parent=1 // pred_check
      _
    $region23: #{residual_forward.1} parent=1 // pred_check_branch
      %49 = sbr.rel (0) target = $region25
    $region24: #{residual_forward.1} parent=1 // pred_region
      %s51 = ssub.s32 4096, 4096
      %52 = vsyncadd [#allocation7], %s51
      %s53 = sshll.u32 [#allocation8], 4
      %s54 = int_to_ptr.vmem [resolvable:$true] %s53
      %59 = dma.hbm_to_vmem [thread:$0]  %s5, 4096, %s54, [#allocation7], 128, 128, 8
    $region25: #{residual_forward.1} parent=1 // pred_fallthru
      _
    // Predicated region
    $region26: #{residual_forward.1} parent=1 // pred_check
      _
    $region27: #{residual_forward.1} parent=1 // pred_check_branch
      %61 = sbr.rel (0) target = $region29
    $region28: #{residual_forward.1} parent=1 // pred_region
      _
    $region29: #{residual_forward.1} parent=1 // pred_fallthru
      _
    // Predicated region
    $region30: #{residual_forward.1} parent=1 // pred_check
      _
    $region31: #{residual_forward.1} parent=1 // pred_check_branch
      %63 = sbr.rel (0) target = $region33
    $region32: #{residual_forward.1} parent=1 // pred_region
      _
    $region33: #{residual_forward.1} parent=1 // pred_fallthru
      _
    // Predicated region
    $region34: #{residual_forward.1} parent=1 // pred_check
      _
    $region35: #{residual_forward.1} parent=1 // pred_check_branch
      %65 = sbr.rel (0) target = $region37
    $region36: #{residual_forward.1} parent=1 // pred_region
      _
    $region37: #{residual_forward.1} parent=1 // pred_fallthru
      _
    // Predicated region
    $region38: #{residual_forward.1} parent=1 // pred_check
      _
    $region39: #{residual_forward.1} parent=1 // pred_check_branch
      %67 = sbr.rel (0) target = $region41
    $region40: #{residual_forward.1} parent=1 // pred_region
      %68 = dma.done [#allocation4], 512
    $region41: #{residual_forward.1} parent=1 // pred_fallthru
      _
    // Predicated region
    $region42: #{residual_forward.1} parent=1 // pred_check
      _
    $region43: #{residual_forward.1} parent=1 // pred_check_branch
      %70 = sbr.rel (0) target = $region45
    $region44: #{residual_forward.1} parent=1 // pred_region
      %71 = dma.done [#allocation7], 4096
    $region45: #{residual_forward.1} parent=1 // pred_fallthru
      _
    // Predicated region
    $region46: #{residual_forward.1} parent=1 // pred_check
      _
    $region47: #{residual_forward.1} parent=1 // pred_check_branch
      %73 = sbr.rel (0) target = $region49
    $region48: #{residual_forward.1} parent=1 // pred_region
      %74 = dma.done [#allocation7], 4096
    $region49: #{residual_forward.1} parent=1 // pred_fallthru
      _
    %v76 = vld [vmem:[%s0] sm:$0xf]
    %v77 = vld [vmem:[#allocation3] sm:$0xff]
    %v78 = vld [vmem:[#allocation3 + $0x8] sm:$0xff]
    %v79 = vld [vmem:[#allocation3 + $0x10] sm:$0xff]
    %v80 = vld [vmem:[#allocation3 + $0x18] sm:$0xff]
    %v81 = vld [vmem:[%s2] sm:$0x3]
    %v83 = vlaneseq
    %v84 = vshrl.u32 %v83, 7
    %v85 = vsub.s32 0, %v84
    %v86 = vrot.slane %v81, %v85
    %v87 = vlaneseq
    %v88 = vshrl.u32 %v87, 7
    %v89 = vsub.s32 1, %v88
    %v90 = vrot.slane %v81, %v89
    %v97 = vunpack.c.l.b16 %v77
    %v98 = vunpack.c.h.b16 %v77
    %v99 = vunpack.c.l.b16 %v78
    %v100 = vunpack.c.h.b16 %v78
    %v101 = vunpack.c.l.b16 %v79
    %v102 = vunpack.c.h.b16 %v79
    %v103 = vunpack.c.l.b16 %v80
    %v104 = vunpack.c.h.b16 %v80
    %v105 = vpack.c.b16 %v99, %v97
    %v106 = vpack.c.b16 %v100, %v98
    %v107 = vpack.c.b16 %v103, %v101
    %v108 = vpack.c.b16 %v104, %v102
    %vm113 = vcmask 261120
    %v115 = vsel %vm113, %v76, 0
    %117 = vmatprep.subr.bf16.mxu0 0
    %118 = vmatpush1.bf16.msra.mxu0 0
    %119 = vmatprep.subr.bf16.mxu0 0
    %120 = vmatpush1.bf16.msra.mxu0 0
    %121 = vmatprep.subr.bf16.mxu0 0
    %122 = vmatpush1.bf16.msra.mxu0 0
    %123 = vmatprep.subr.bf16.mxu0 0
    %124 = vmatpush1.bf16.msra.mxu0 0
    %125 = vmatprep.subr.bf16.mxu0 0
    %126 = vmatpush1.bf16.msra.mxu0 0
    %127 = vmatprep.subr.bf16.mxu0 0
    %128 = vmatpush1.bf16.msra.mxu0 0
    %129 = vmatprep.subr.bf16.mxu0 %v108
    %130 = vmatpush1.bf16.msra.mxu0 %v107
    %131 = vmatprep.subr.bf16.mxu0 %v106
    %132 = vmatpush1.bf16.msra.mxu0 %v105
    %133 = vmatprep.subr.bf16.mxu0 0
    %134 = vmatpush2.bf16.msra.mxu0 0
    %135 = vmatprep.subr.bf16.mxu0 0
    %136 = vmatpush2.bf16.msra.mxu0 0
    %137 = vmatprep.subr.bf16.mxu0 0
    %138 = vmatpush2.bf16.msra.mxu0 0
    %139 = vmatprep.subr.bf16.mxu0 0
    %140 = vmatpush2.bf16.msra.mxu0 0
    %141 = vmatprep.subr.bf16.mxu0 0
    %142 = vmatpush2.bf16.msra.mxu0 0
    %143 = vmatprep.subr.bf16.mxu0 0
    %144 = vmatpush2.bf16.msra.mxu0 0
    %145 = vmatprep.subr.bf16.mxu0 0
    %146 = vmatpush2.bf16.msra.mxu0 0
    %147 = vmatprep.subr.bf16.mxu0 0
    %148 = vmatpush2.bf16.msra.mxu0 0
    %149 = vmatprep.mubr.bf16.mxu0 0
    %150 = vmatmul.mubr.bf16.gmra.mxu0 %v115
    %v151 = vpop.f32.mrf.mxu0
    %v152 = vadd.f32 %v86, %v151
    %v153 = vpop.f32.mrf.mxu0
    %v154 = vadd.f32 %v90, %v153
    %v155 = vpop.f32.mrf.mxu0
    %v156 = vpop.f32.mrf.mxu0
    %157 = vdwg.mxu0
    %v158 = vmax.f32 %v152, 0.0
    %v159 = vmax.f32 %v154, 0.0
    %v160 = vpack.c.bf16 %v158, %v158
    %v161 = vpack.c.bf16 %v159, %v159
    %v162 = vld [vmem:[#allocation6] sm:$0xff]
    %v163 = vld [vmem:[#allocation6 + $0x8] sm:$0xff]
    %v164 = vld [vmem:[#allocation6 + $0x10] sm:$0xff]
    %v165 = vld [vmem:[#allocation6 + $0x18] sm:$0xff]
    %v166 = vld [vmem:[#allocation6 + $0x20] sm:$0xff]
    %v167 = vld [vmem:[#allocation6 + $0x28] sm:$0xff]
    %v168 = vld [vmem:[#allocation6 + $0x30] sm:$0xff]
    %v169 = vld [vmem:[#allocation6 + $0x38] sm:$0xff]
    %v170 = vld [vmem:[#allocation6 + $0x40] sm:$0xff]
    %v171 = vld [vmem:[#allocation6 + $0x48] sm:$0xff]
    %v172 = vld [vmem:[#allocation6 + $0x50] sm:$0xff]
    %v173 = vld [vmem:[#allocation6 + $0x58] sm:$0xff]
    %v174 = vld [vmem:[#allocation6 + $0x60] sm:$0xff]
    %v175 = vld [vmem:[#allocation6 + $0x68] sm:$0xff]
    %v176 = vld [vmem:[#allocation6 + $0x70] sm:$0xff]
    %v177 = vld [vmem:[#allocation6 + $0x78] sm:$0xff]
    %v178 = vld [vmem:[#allocation6 + $0x80] sm:$0xff]
    %v179 = vld [vmem:[#allocation6 + $0x88] sm:$0xff]
    %v180 = vld [vmem:[#allocation6 + $0x90] sm:$0xff]
    %v181 = vld [vmem:[#allocation6 + $0x98] sm:$0xff]
    %v182 = vld [vmem:[#allocation6 + $0xa0] sm:$0xff]
    %v183 = vld [vmem:[#allocation6 + $0xa8] sm:$0xff]
    %v184 = vld [vmem:[#allocation6 + $0xb0] sm:$0xff]
    %v185 = vld [vmem:[#allocation6 + $0xb8] sm:$0xff]
    %v186 = vld [vmem:[#allocation6 + $0xc0] sm:$0xff]
    %v187 = vld [vmem:[#allocation6 + $0xc8] sm:$0xff]
    %v188 = vld [vmem:[#allocation6 + $0xd0] sm:$0xff]
    %v189 = vld [vmem:[#allocation6 + $0xd8] sm:$0xff]
    %v190 = vld [vmem:[#allocation6 + $0xe0] sm:$0xff]
    %v191 = vld [vmem:[#allocation6 + $0xe8] sm:$0xff]
    %v192 = vld [vmem:[#allocation6 + $0xf0] sm:$0xff]
    %v193 = vld [vmem:[#allocation6 + $0xf8] sm:$0xff]
    %v194 = vld [vmem:[%s4] sm:$0x3]
    %v196 = vlaneseq
    %v197 = vshrl.u32 %v196, 7
    %v198 = vsub.s32 0, %v197
    %v199 = vrot.slane %v194, %v198
    %v200 = vlaneseq
    %v201 = vshrl.u32 %v200, 7
    %v202 = vsub.s32 1, %v201
    %v203 = vrot.slane %v194, %v202
    %v238 = vunpack.c.l.b16 %v162
    %v239 = vunpack.c.h.b16 %v162
    %v240 = vunpack.c.l.b16 %v163
    %v241 = vunpack.c.h.b16 %v163
    %v242 = vunpack.c.l.b16 %v164
    %v243 = vunpack.c.h.b16 %v164
    %v244 = vunpack.c.l.b16 %v165
    %v245 = vunpack.c.h.b16 %v165
    %v246 = vunpack.c.l.b16 %v166
    %v247 = vunpack.c.h.b16 %v166
    %v248 = vunpack.c.l.b16 %v167
    %v249 = vunpack.c.h.b16 %v167
    %v250 = vunpack.c.l.b16 %v168
    %v251 = vunpack.c.h.b16 %v168
    %v252 = vunpack.c.l.b16 %v169
    %v253 = vunpack.c.h.b16 %v169
    %v254 = vunpack.c.l.b16 %v170
    %v255 = vunpack.c.h.b16 %v170
    %v256 = vunpack.c.l.b16 %v171
    %v257 = vunpack.c.h.b16 %v171
    %v258 = vunpack.c.l.b16 %v172
    %v259 = vunpack.c.h.b16 %v172
    %v260 = vunpack.c.l.b16 %v173
    %v261 = vunpack.c.h.b16 %v173
    %v262 = vunpack.c.l.b16 %v174
    %v263 = vunpack.c.h.b16 %v174
    %v264 = vunpack.c.l.b16 %v175
    %v265 = vunpack.c.h.b16 %v175
    %v266 = vunpack.c.l.b16 %v176
    %v267 = vunpack.c.h.b16 %v176
    %v268 = vunpack.c.l.b16 %v177
    %v269 = vunpack.c.h.b16 %v177
    %v270 = vunpack.c.l.b16 %v178
    %v271 = vunpack.c.h.b16 %v178
    %v272 = vunpack.c.l.b16 %v179
    %v273 = vunpack.c.h.b16 %v179
    %v274 = vunpack.c.l.b16 %v180
    %v275 = vunpack.c.h.b16 %v180
    %v276 = vunpack.c.l.b16 %v181
    %v277 = vunpack.c.h.b16 %v181
    %v278 = vunpack.c.l.b16 %v182
    %v279 = vunpack.c.h.b16 %v182
    %v280 = vunpack.c.l.b16 %v183
    %v281 = vunpack.c.h.b16 %v183
    %v282 = vunpack.c.l.b16 %v184
    %v283 = vunpack.c.h.b16 %v184
    %v284 = vunpack.c.l.b16 %v185
    %v285 = vunpack.c.h.b16 %v185
    %v286 = vunpack.c.l.b16 %v186
    %v287 = vunpack.c.h.b16 %v186
    %v288 = vunpack.c.l.b16 %v187
    %v289 = vunpack.c.h.b16 %v187
    %v290 = vunpack.c.l.b16 %v188
    %v291 = vunpack.c.h.b16 %v188
    %v292 = vunpack.c.l.b16 %v189
    %v293 = vunpack.c.h.b16 %v189
    %v294 = vunpack.c.l.b16 %v190
    %v295 = vunpack.c.h.b16 %v190
    %v296 = vunpack.c.l.b16 %v191
    %v297 = vunpack.c.h.b16 %v191
    %v298 = vunpack.c.l.b16 %v192
    %v299 = vunpack.c.h.b16 %v192
    %v300 = vunpack.c.l.b16 %v193
    %v301 = vunpack.c.h.b16 %v193
    %v302 = vpack.c.b16 %v240, %v238
    %v303 = vpack.c.b16 %v241, %v239
    %v304 = vpack.c.b16 %v244, %v242
    %v305 = vpack.c.b16 %v245, %v243
    %v306 = vpack.c.b16 %v248, %v246
    %v307 = vpack.c.b16 %v249, %v247
    %v308 = vpack.c.b16 %v252, %v250
    %v309 = vpack.c.b16 %v253, %v251
    %v310 = vpack.c.b16 %v256, %v254
    %v311 = vpack.c.b16 %v257, %v255
    %v312 = vpack.c.b16 %v260, %v258
    %v313 = vpack.c.b16 %v261, %v259
    %v314 = vpack.c.b16 %v264, %v262
    %v315 = vpack.c.b16 %v265, %v263
    %v316 = vpack.c.b16 %v268, %v266
    %v317 = vpack.c.b16 %v269, %v267
    %v318 = vpack.c.b16 %v272, %v270
    %v319 = vpack.c.b16 %v273, %v271
    %v320 = vpack.c.b16 %v276, %v274
    %v321 = vpack.c.b16 %v277, %v275
    %v322 = vpack.c.b16 %v280, %v278
    %v323 = vpack.c.b16 %v281, %v279
    %v324 = vpack.c.b16 %v284, %v282
    %v325 = vpack.c.b16 %v285, %v283
    %v326 = vpack.c.b16 %v288, %v286
    %v327 = vpack.c.b16 %v289, %v287
    %v328 = vpack.c.b16 %v292, %v290
    %v329 = vpack.c.b16 %v293, %v291
    %v330 = vpack.c.b16 %v296, %v294
    %v331 = vpack.c.b16 %v297, %v295
    %v332 = vpack.c.b16 %v300, %v298
    %v333 = vpack.c.b16 %v301, %v299
    %366 = vmatprep.subr.bf16.mxu0 %v317
    %367 = vmatpush1.bf16.msra.mxu0 %v316
    %368 = vmatprep.subr.bf16.mxu0 %v315
    %369 = vmatpush1.bf16.msra.mxu0 %v314
    %370 = vmatprep.subr.bf16.mxu0 %v313
    %371 = vmatpush1.bf16.msra.mxu0 %v312
    %372 = vmatprep.subr.bf16.mxu0 %v311
    %373 = vmatpush1.bf16.msra.mxu0 %v310
    %374 = vmatprep.subr.bf16.mxu0 %v309
    %375 = vmatpush1.bf16.msra.mxu0 %v308
    %376 = vmatprep.subr.bf16.mxu0 %v307
    %377 = vmatpush1.bf16.msra.mxu0 %v306
    %378 = vmatprep.subr.bf16.mxu0 %v305
    %379 = vmatpush1.bf16.msra.mxu0 %v304
    %380 = vmatprep.subr.bf16.mxu0 %v303
    %381 = vmatpush1.bf16.msra.mxu0 %v302
    %382 = vmatprep.subr.bf16.mxu0 %v333
    %383 = vmatpush2.bf16.msra.mxu0 %v332
    %384 = vmatprep.subr.bf16.mxu0 %v331
    %385 = vmatpush2.bf16.msra.mxu0 %v330
    %386 = vmatprep.subr.bf16.mxu0 %v329
    %387 = vmatpush2.bf16.msra.mxu0 %v328
    %388 = vmatprep.subr.bf16.mxu0 %v327
    %389 = vmatpush2.bf16.msra.mxu0 %v326
    %390 = vmatprep.subr.bf16.mxu0 %v325
    %391 = vmatpush2.bf16.msra.mxu0 %v324
    %392 = vmatprep.subr.bf16.mxu0 %v323
    %393 = vmatpush2.bf16.msra.mxu0 %v322
    %394 = vmatprep.subr.bf16.mxu0 %v321
    %395 = vmatpush2.bf16.msra.mxu0 %v320
    %396 = vmatprep.subr.bf16.mxu0 %v319
    %397 = vmatpush2.bf16.msra.mxu0 %v318
    %398 = vmatprep.mubr.bf16.mxu0 %v161
    %399 = vmatmul.mubr.bf16.gmra.mxu0 %v160
    %v400 = vpop.f32.mrf.mxu0
    %v401 = vadd.f32 %v199, %v400
    %v402 = vpop.f32.mrf.mxu0
    %v403 = vadd.f32 %v203, %v402
    %v404 = vpop.f32.mrf.mxu0
    %v405 = vpop.f32.mrf.mxu0
    %406 = vdwg.mxu0
    %v407 = vmax.f32 %v401, 0.0
    %v408 = vmax.f32 %v403, 0.0
    %v409 = vpack.c.bf16 %v407, %v407
    %v410 = vpack.c.bf16 %v408, %v408
    %v411 = vld [vmem:[#allocation8] sm:$0xff]
    %v412 = vld [vmem:[#allocation8 + $0x8] sm:$0xff]
    %v413 = vld [vmem:[#allocation8 + $0x10] sm:$0xff]
    %v414 = vld [vmem:[#allocation8 + $0x18] sm:$0xff]
    %v415 = vld [vmem:[#allocation8 + $0x20] sm:$0xff]
    %v416 = vld [vmem:[#allocation8 + $0x28] sm:$0xff]
    %v417 = vld [vmem:[#allocation8 + $0x30] sm:$0xff]
    %v418 = vld [vmem:[#allocation8 + $0x38] sm:$0xff]
    %v419 = vld [vmem:[#allocation8 + $0x40] sm:$0xff]
    %v420 = vld [vmem:[#allocation8 + $0x48] sm:$0xff]
    %v421 = vld [vmem:[#allocation8 + $0x50] sm:$0xff]
    %v422 = vld [vmem:[#allocation8 + $0x58] sm:$0xff]
    %v423 = vld [vmem:[#allocation8 + $0x60] sm:$0xff]
    %v424 = vld [vmem:[#allocation8 + $0x68] sm:$0xff]
    %v425 = vld [vmem:[#allocation8 + $0x70] sm:$0xff]
    %v426 = vld [vmem:[#allocation8 + $0x78] sm:$0xff]
    %v427 = vld [vmem:[#allocation8 + $0x80] sm:$0xff]
    %v428 = vld [vmem:[#allocation8 + $0x88] sm:$0xff]
    %v429 = vld [vmem:[#allocation8 + $0x90] sm:$0xff]
    %v430 = vld [vmem:[#allocation8 + $0x98] sm:$0xff]
    %v431 = vld [vmem:[#allocation8 + $0xa0] sm:$0xff]
    %v432 = vld [vmem:[#allocation8 + $0xa8] sm:$0xff]
    %v433 = vld [vmem:[#allocation8 + $0xb0] sm:$0xff]
    %v434 = vld [vmem:[#allocation8 + $0xb8] sm:$0xff]
    %v435 = vld [vmem:[#allocation8 + $0xc0] sm:$0xff]
    %v436 = vld [vmem:[#allocation8 + $0xc8] sm:$0xff]
    %v437 = vld [vmem:[#allocation8 + $0xd0] sm:$0xff]
    %v438 = vld [vmem:[#allocation8 + $0xd8] sm:$0xff]
    %v439 = vld [vmem:[#allocation8 + $0xe0] sm:$0xff]
    %v440 = vld [vmem:[#allocation8 + $0xe8] sm:$0xff]
    %v441 = vld [vmem:[#allocation8 + $0xf0] sm:$0xff]
    %v442 = vld [vmem:[#allocation8 + $0xf8] sm:$0xff]
    %v443 = vld [vmem:[%s6] sm:$0x3]
    %v445 = vlaneseq
    %v446 = vshrl.u32 %v445, 7
    %v447 = vsub.s32 0, %v446
    %v448 = vrot.slane %v443, %v447
    %v449 = vlaneseq
    %v450 = vshrl.u32 %v449, 7
    %v451 = vsub.s32 1, %v450
    %v452 = vrot.slane %v443, %v451
    %v487 = vunpack.c.l.b16 %v411
    %v488 = vunpack.c.h.b16 %v411
    %v489 = vunpack.c.l.b16 %v412
    %v490 = vunpack.c.h.b16 %v412
    %v491 = vunpack.c.l.b16 %v413
    %v492 = vunpack.c.h.b16 %v413
    %v493 = vunpack.c.l.b16 %v414
    %v494 = vunpack.c.h.b16 %v414
    %v495 = vunpack.c.l.b16 %v415
    %v496 = vunpack.c.h.b16 %v415
    %v497 = vunpack.c.l.b16 %v416
    %v498 = vunpack.c.h.b16 %v416
    %v499 = vunpack.c.l.b16 %v417
    %v500 = vunpack.c.h.b16 %v417
    %v501 = vunpack.c.l.b16 %v418
    %v502 = vunpack.c.h.b16 %v418
    %v503 = vunpack.c.l.b16 %v419
    %v504 = vunpack.c.h.b16 %v419
    %v505 = vunpack.c.l.b16 %v420
    %v506 = vunpack.c.h.b16 %v420
    %v507 = vunpack.c.l.b16 %v421
    %v508 = vunpack.c.h.b16 %v421
    %v509 = vunpack.c.l.b16 %v422
    %v510 = vunpack.c.h.b16 %v422
    %v511 = vunpack.c.l.b16 %v423
    %v512 = vunpack.c.h.b16 %v423
    %v513 = vunpack.c.l.b16 %v424
    %v514 = vunpack.c.h.b16 %v424
    %v515 = vunpack.c.l.b16 %v425
    %v516 = vunpack.c.h.b16 %v425
    %v517 = vunpack.c.l.b16 %v426
    %v518 = vunpack.c.h.b16 %v426
    %v519 = vunpack.c.l.b16 %v427
    %v520 = vunpack.c.h.b16 %v427
    %v521 = vunpack.c.l.b16 %v428
    %v522 = vunpack.c.h.b16 %v428
    %v523 = vunpack.c.l.b16 %v429
    %v524 = vunpack.c.h.b16 %v429
    %v525 = vunpack.c.l.b16 %v430
    %v526 = vunpack.c.h.b16 %v430
    %v527 = vunpack.c.l.b16 %v431
    %v528 = vunpack.c.h.b16 %v431
    %v529 = vunpack.c.l.b16 %v432
    %v530 = vunpack.c.h.b16 %v432
    %v531 = vunpack.c.l.b16 %v433
    %v532 = vunpack.c.h.b16 %v433
    %v533 = vunpack.c.l.b16 %v434
    %v534 = vunpack.c.h.b16 %v434
    %v535 = vunpack.c.l.b16 %v435
    %v536 = vunpack.c.h.b16 %v435
    %v537 = vunpack.c.l.b16 %v436
    %v538 = vunpack.c.h.b16 %v436
    %v539 = vunpack.c.l.b16 %v437
    %v540 = vunpack.c.h.b16 %v437
    %v541 = vunpack.c.l.b16 %v438
    %v542 = vunpack.c.h.b16 %v438
    %v543 = vunpack.c.l.b16 %v439
    %v544 = vunpack.c.h.b16 %v439
    %v545 = vunpack.c.l.b16 %v440
    %v546 = vunpack.c.h.b16 %v440
    %v547 = vunpack.c.l.b16 %v441
    %v548 = vunpack.c.h.b16 %v441
    %v549 = vunpack.c.l.b16 %v442
    %v550 = vunpack.c.h.b16 %v442
    %v551 = vpack.c.b16 %v489, %v487
    %v552 = vpack.c.b16 %v490, %v488
    %v553 = vpack.c.b16 %v493, %v491
    %v554 = vpack.c.b16 %v494, %v492
    %v555 = vpack.c.b16 %v497, %v495
    %v556 = vpack.c.b16 %v498, %v496
    %v557 = vpack.c.b16 %v501, %v499
    %v558 = vpack.c.b16 %v502, %v500
    %v559 = vpack.c.b16 %v505, %v503
    %v560 = vpack.c.b16 %v506, %v504
    %v561 = vpack.c.b16 %v509, %v507
    %v562 = vpack.c.b16 %v510, %v508
    %v563 = vpack.c.b16 %v513, %v511
    %v564 = vpack.c.b16 %v514, %v512
    %v565 = vpack.c.b16 %v517, %v515
    %v566 = vpack.c.b16 %v518, %v516
    %v567 = vpack.c.b16 %v521, %v519
    %v568 = vpack.c.b16 %v522, %v520
    %v569 = vpack.c.b16 %v525, %v523
    %v570 = vpack.c.b16 %v526, %v524
    %v571 = vpack.c.b16 %v529, %v527
    %v572 = vpack.c.b16 %v530, %v528
    %v573 = vpack.c.b16 %v533, %v531
    %v574 = vpack.c.b16 %v534, %v532
    %v575 = vpack.c.b16 %v537, %v535
    %v576 = vpack.c.b16 %v538, %v536
    %v577 = vpack.c.b16 %v541, %v539
    %v578 = vpack.c.b16 %v542, %v540
    %v579 = vpack.c.b16 %v545, %v543
    %v580 = vpack.c.b16 %v546, %v544
    %v581 = vpack.c.b16 %v549, %v547
    %v582 = vpack.c.b16 %v550, %v548
    %615 = vmatprep.subr.bf16.mxu0 %v566
    %616 = vmatpush1.bf16.msra.mxu0 %v565
    %617 = vmatprep.subr.bf16.mxu0 %v564
    %618 = vmatpush1.bf16.msra.mxu0 %v563
    %619 = vmatprep.subr.bf16.mxu0 %v562
    %620 = vmatpush1.bf16.msra.mxu0 %v561
    %621 = vmatprep.subr.bf16.mxu0 %v560
    %622 = vmatpush1.bf16.msra.mxu0 %v559
    %623 = vmatprep.subr.bf16.mxu0 %v558
    %624 = vmatpush1.bf16.msra.mxu0 %v557
    %625 = vmatprep.subr.bf16.mxu0 %v556
    %626 = vmatpush1.bf16.msra.mxu0 %v555
    %627 = vmatprep.subr.bf16.mxu0 %v554
    %628 = vmatpush1.bf16.msra.mxu0 %v553
    %629 = vmatprep.subr.bf16.mxu0 %v552
    %630 = vmatpush1.bf16.msra.mxu0 %v551
    %631 = vmatprep.subr.bf16.mxu0 %v582
    %632 = vmatpush2.bf16.msra.mxu0 %v581
    %633 = vmatprep.subr.bf16.mxu0 %v580
    %634 = vmatpush2.bf16.msra.mxu0 %v579
    %635 = vmatprep.subr.bf16.mxu0 %v578
    %636 = vmatpush2.bf16.msra.mxu0 %v577
    %637 = vmatprep.subr.bf16.mxu0 %v576
    %638 = vmatpush2.bf16.msra.mxu0 %v575
    %639 = vmatprep.subr.bf16.mxu0 %v574
    %640 = vmatpush2.bf16.msra.mxu0 %v573
    %641 = vmatprep.subr.bf16.mxu0 %v572
    %642 = vmatpush2.bf16.msra.mxu0 %v571
    %643 = vmatprep.subr.bf16.mxu0 %v570
    %644 = vmatpush2.bf16.msra.mxu0 %v569
    %645 = vmatprep.subr.bf16.mxu0 %v568
    %646 = vmatpush2.bf16.msra.mxu0 %v567
    %647 = vmatprep.mubr.bf16.mxu0 %v410
    %648 = vmatmul.mubr.bf16.gmra.mxu0 %v409
    %v649 = vpop.f32.mrf.mxu0
    %v650 = vadd.f32 %v448, %v649
    %v651 = vpop.f32.mrf.mxu0
    %v652 = vadd.f32 %v452, %v651
    %v653 = vpop.f32.mrf.mxu0
    %v654 = vpop.f32.mrf.mxu0
    %655 = vdwg.mxu0
    %v656 = vmax.f32 %v650, 0.0
    %v657 = vmax.f32 %v652, 0.0
    %v658 = vld [vmem:[%s7] sm:$0x3]
    %v660 = vlaneseq
    %v661 = vshrl.u32 %v660, 7
    %v662 = vsub.s32 0, %v661
    %v663 = vrot.slane %v658, %v662
    %v664 = vlaneseq
    %v665 = vshrl.u32 %v664, 7
    %v666 = vsub.s32 1, %v665
    %v667 = vrot.slane %v658, %v666
    %v670 = vmul.f32 %v656, %v663
    %v671 = vmul.f32 %v657, %v667
    %v672 = vadd.f32 %v670, %v671
    %673 = vadd.xlane.f32.xlu0 %v672
    %v674 = vpop.xlane.xlu0 %673
    %s675 = sld [smem:[#allocation2]]
    %v676 = vstv %s675
    %v677 = vadd.f32 %v674, %v676
    %v679 = vlaneseq
    %v680 = vand.u32 %v679, 127
    %v681 = vlaneseq
    %v682 = vshrl.u32 %v681, 7
    %v683 = vsub.s32 %v680, %v682
    %v684 = vrot.slane %v677, %v683
    %vm686 = vcmask 57344
    %687 = vst.msk [vmem:[#allocation9] sm:$0x1] %vm686, %v684
    // Predicated region
    $region50: #{residual_forward.1} parent=1 // pred_check
      _
    $region51: #{residual_forward.1} parent=1 // pred_check_branch
      %689 = sbr.rel (0) target = $region53
    $region52: #{residual_forward.1} parent=1 // pred_region
      %s691 = ssub.s32 16, 16
      %692 = vsyncadd [#allocation5], %s691
      %s694 = sshll.u32 [#allocation9], 4
      %s695 = int_to_ptr.vmem [resolvable:$true] %s694
      %697 = dma.vmem_to_hbm [thread:$0]  %s695, 16, %s9, [#allocation5]
    $region53: #{residual_forward.1} parent=1 // pred_fallthru
      _
    // Predicated region
    $region54: #{residual_forward.1} parent=1 // pred_check
      _
    $region55: #{residual_forward.1} parent=1 // pred_check_branch
      %699 = sbr.rel (0) target = $region57
    $region56: #{residual_forward.1} parent=1 // pred_region
      %700 = dma.done [#allocation5], 16
    $region57: #{residual_forward.1} parent=1 // pred_fallthru
      _
    %701 = vsyncpa [#allocation4], 1
    %702 = vsyncpa [#allocation7], 1
    %703 = vsyncpa [#allocation5], 1

</llo_original>
